<compile_context>
chip_gen: v6e
topology: v6e:2x2x1
jax: 0.10.0
libtpu: 0.0.40
codegen_flags: <defaults>
</compile_context>

<pallas_src>
import jax
import jax.numpy as jnp
from jax.experimental import pallas as pl
from jax.experimental.pallas import tpu as pltpu

EPS = 1e-5


def _inorm_relu(h):
    # InstanceNorm1d (affine=False): normalize each channel over L (last axis,
    # lanes), biased variance, then ReLU.  All in f32.
    mean = jnp.mean(h, axis=-1, keepdims=True)
    var = jnp.mean((h - mean) * (h - mean), axis=-1, keepdims=True)
    h = (h - mean) * jax.lax.rsqrt(var + EPS)
    return jnp.maximum(h, 0.0)


def _mlp_kernel(x_ref, w1_ref, w2_ref, w3_ref, b3_ref, o_ref):
    # x_ref block: (NB, C0, L)  -- NB batch instances, NCL layout.
    # Weights are PyTorch Conv1d layout (Cout, Cin); constant index_map keeps
    # them resident in VMEM across grid steps.
    w1 = w1_ref[...]          # (C1, C0)
    w2 = w2_ref[...]          # (C2, C1)
    w3 = w3_ref[...]          # (C3, C2)
    b3 = b3_ref[...]          # (C3, 1)

    nb = x_ref.shape[0]
    # Static unroll over the (small) per-step batch: each instance is a clean
    # 2-D (C, L) tile, so the channel contraction maps straight onto the MXU
    # and the InstanceNorm reduction stays on the lane axis.
    for n in range(nb):
        h = x_ref[n].astype(jnp.float32)                           # (C0, L)
        # Layers 1/2: conv bias omitted -- it is cancelled exactly by the
        # following InstanceNorm mean subtraction.
        h = jnp.dot(w1, h, preferred_element_type=jnp.float32)     # (C1, L)
        h = _inorm_relu(h)
        h = jnp.dot(w2, h, preferred_element_type=jnp.float32)     # (C2, L)
        h = _inorm_relu(h)
        h = jnp.dot(w3, h, preferred_element_type=jnp.float32) + b3  # (C3, L)
        o_ref[n] = h.astype(o_ref.dtype)


def _pick_block_batch(n):
    """Instances per grid step: amortize per-step overhead, but keep >=2 grid
    steps whenever n >= 2 so both v7x TensorCores get work."""
    if n <= 1:
        return 1
    for nb in range(n // 2, 0, -1):
        if n % nb == 0:
            return nb
    return 1


def mlp_pallas(x_ncl, params):
    """x_ncl: (N, C0, L) float32, matching PyTorch Conv1d input layout."""
    (w1, _b1), (w2, _b2), (w3, b3) = params    # b1/b2 are dead under InstanceNorm
    N, C0, L = x_ncl.shape
    C1, C2, C3 = w1.shape[0], w2.shape[0], w3.shape[0]

    nb = _pick_block_batch(N)
    grid = N // nb

    b3_col = b3.reshape(C3, 1).astype(jnp.float32)

    itemsize = 4
    cost = pl.CostEstimate(
        flops=2 * N * L * (C0 * C1 + C1 * C2 + C2 * C3),
        transcendentals=N * (C1 + C2),                 # rsqrt per channel per norm
        bytes_accessed=(N * C0 * L + N * C3 * L
                        + w1.size + w2.size + w3.size + C3) * itemsize,
    )

    const2d = lambda i: (0, 0)   # weights/bias: same block every step (VMEM-resident)

    return pl.pallas_call(
        _mlp_kernel,
        out_shape=jax.ShapeDtypeStruct((N, C3, L), jnp.float32),
        grid_spec=pltpu.PrefetchScalarGridSpec(
            num_scalar_prefetch=0,
            grid=(grid,),
            in_specs=[
                pl.BlockSpec((nb, C0, L), lambda i: (i, 0, 0)),
                pl.BlockSpec((C1, C0), const2d),
                pl.BlockSpec((C2, C1), const2d),
                pl.BlockSpec((C3, C2), const2d),
                pl.BlockSpec((C3, 1), const2d),
            ],
            out_specs=pl.BlockSpec((nb, C3, L), lambda i: (i, 0, 0)),
        ),
        compiler_params=pltpu.CompilerParams(
            dimension_semantics=("parallel",)),
        cost_estimate=cost,
    )(x_ncl, w1, w2, w3, b3_col)


def mlp_reference(x_ncl, params):
    """Pure-JAX reference matching the PyTorch module exactly (NCL layout,
    including the conv biases the kernel provably drops)."""
    h = x_ncl
    n_layers = len(params)
    for i, (w, b) in enumerate(params):
        # Conv1d kernel_size=1: (N, Cin, L) x (Cout, Cin) -> (N, Cout, L)
        h = jnp.einsum('oc,ncl->nol', w, h) + b.reshape(1, -1, 1)
        if i < n_layers - 1:
            mean = jnp.mean(h, axis=2, keepdims=True)
            var = jnp.mean((h - mean) ** 2, axis=2, keepdims=True)
            h = (h - mean) / jnp.sqrt(var + EPS)
            h = jnp.maximum(h, 0.0)
    return h


def init_params(key, channels):
    """Deterministic synthetic weights in PyTorch Conv1d layout:
    W (Cout, Cin), b (Cout,)."""
    params = []
    for i in range(1, len(channels)):
        key, kw, kb = jax.random.split(key, 3)
        cin, cout = channels[i - 1], channels[i]
        w = jax.random.normal(kw, (cout, cin), jnp.float32) * (1.0 / jnp.sqrt(cin))
        b = jax.random.normal(kb, (cout,), jnp.float32) * 0.1
        params.append((w, b))
    return params


if __name__ == "__main__":
    key = jax.random.PRNGKey(0)
    channels = [4, 32, 32, 8]            # MLP(channels=[4, 32, 32, 8], do_bn=True, xd='1')
    N, L = 2, 16

    key, kx = jax.random.split(key)
    x = jax.random.normal(kx, (N, channels[0], L), jnp.float32)   # (N, C, L) like PyTorch

    params = init_params(key, channels)

    out = jax.block_until_ready(mlp_pallas(x, params))
    ref = mlp_reference(x, params)

    assert out.shape == (N, channels[-1], L)
    assert jnp.max(jnp.abs(out - ref)) < 1e-4, "mismatch vs reference"

    print("KERNEL_OK")
</pallas_src>

<mosaic_0001>
module attributes {stable_mosaic.version = 11 : i64} {
  func.func @_mlp_kernel(%arg0: i32, %arg1: memref<1x4x16xf32, #tpu.memory_space<vmem>>, %arg2: memref<32x4xf32, #tpu.memory_space<vmem>>, %arg3: memref<32x32xf32, #tpu.memory_space<vmem>>, %arg4: memref<8x32xf32, #tpu.memory_space<vmem>>, %arg5: memref<8x1xf32, #tpu.memory_space<vmem>>, %arg6: memref<1x8x16xf32, #tpu.memory_space<vmem>>) attributes {dimension_semantics = [#tpu.dimension_semantics<parallel>], iteration_bounds = array<i64: 2>, scalar_prefetch = 0 : i64, scratch_operands = 0 : i64, tpu.core_type = #tpu.core_type<tc>, window_params = [{transform_indices = @transform_0, window_bounds = array<i64: 1, 4, 16>}, {pipeline_mode = #tpu.pipeline_mode<synchronous>, transform_indices = @transform_1, window_bounds = array<i64: 32, 4>}, {pipeline_mode = #tpu.pipeline_mode<synchronous>, transform_indices = @transform_2, window_bounds = array<i64: 32, 32>}, {pipeline_mode = #tpu.pipeline_mode<synchronous>, transform_indices = @transform_3, window_bounds = array<i64: 8, 32>}, {pipeline_mode = #tpu.pipeline_mode<synchronous>, transform_indices = @transform_4, window_bounds = array<i64: 8, 1>}, {transform_indices = @transform_5, window_bounds = array<i64: 1, 8, 16>}]} {
    %c0 = arith.constant 0 : index
    %c0_0 = arith.constant 0 : index
    %0 = vector.load %arg2[%c0, %c0_0] : memref<32x4xf32, #tpu.memory_space<vmem>>, vector<32x4xf32>
    %c0_1 = arith.constant 0 : index
    %c0_2 = arith.constant 0 : index
    %1 = vector.load %arg3[%c0_1, %c0_2] : memref<32x32xf32, #tpu.memory_space<vmem>>, vector<32x32xf32>
    %c0_3 = arith.constant 0 : index
    %c0_4 = arith.constant 0 : index
    %2 = vector.load %arg4[%c0_3, %c0_4] : memref<8x32xf32, #tpu.memory_space<vmem>>, vector<8x32xf32>
    %c0_5 = arith.constant 0 : index
    %c0_6 = arith.constant 0 : index
    %3 = vector.load %arg5[%c0_5, %c0_6] : memref<8x1xf32, #tpu.memory_space<vmem>>, vector<8x1xf32>
    %c0_7 = arith.constant 0 : index
    %c0_8 = arith.constant 0 : index
    %c0_9 = arith.constant 0 : index
    %4 = vector.load %arg1[%c0_7, %c0_8, %c0_9] : memref<1x4x16xf32, #tpu.memory_space<vmem>>, vector<1x4x16xf32>
    %5 = vector.shape_cast %4 : vector<1x4x16xf32> to vector<4x16xf32>
    %cst = arith.constant dense<0.000000e+00> : vector<32x16xf32>
    %6 = tpu.matmul %0, %5, %cst {dimension_numbers = #tpu.dot_dimension_numbers<[1], [0], [0], [1], [0, 0, 1, 1], [], []>} : vector<32x4xf32>, vector<4x16xf32>, vector<32x16xf32> -> vector<32x16xf32>
    %cst_10 = arith.constant dense<0.000000e+00> : vector<32xf32>
    %7 = vector.multi_reduction <add>, %6, %cst_10 [1] : vector<32x16xf32> to vector<32xf32>
    %8 = vector.shape_cast %7 : vector<32xf32> to vector<32x1xf32>
    %cst_11 = arith.constant 1.600000e+01 : f32
    %9 = vector.broadcast %cst_11 : f32 to vector<32x1xf32>
    %10 = arith.divf %8, %9 : vector<32x1xf32>
    %11 = vector.broadcast %10 : vector<32x1xf32> to vector<32x16xf32>
    %12 = arith.subf %6, %11 : vector<32x16xf32>
    %13 = vector.broadcast %10 : vector<32x1xf32> to vector<32x16xf32>
    %14 = arith.subf %6, %13 : vector<32x16xf32>
    %15 = arith.mulf %12, %14 : vector<32x16xf32>
    %cst_12 = arith.constant dense<0.000000e+00> : vector<32xf32>
    %16 = vector.multi_reduction <add>, %15, %cst_12 [1] : vector<32x16xf32> to vector<32xf32>
    %17 = vector.shape_cast %16 : vector<32xf32> to vector<32x1xf32>
    %cst_13 = arith.constant 1.600000e+01 : f32
    %18 = vector.broadcast %cst_13 : f32 to vector<32x1xf32>
    %19 = arith.divf %17, %18 : vector<32x1xf32>
    %20 = vector.broadcast %10 : vector<32x1xf32> to vector<32x16xf32>
    %21 = arith.subf %6, %20 : vector<32x16xf32>
    %cst_14 = arith.constant 9.99999974E-6 : f32
    %22 = vector.broadcast %cst_14 : f32 to vector<32x1xf32>
    %23 = arith.addf %19, %22 : vector<32x1xf32>
    %24 = math.rsqrt %23 : vector<32x1xf32>
    %25 = vector.broadcast %24 : vector<32x1xf32> to vector<32x16xf32>
    %26 = arith.mulf %21, %25 : vector<32x16xf32>
    %cst_15 = arith.constant 0.000000e+00 : f32
    %27 = vector.broadcast %cst_15 : f32 to vector<32x16xf32>
    %28 = arith.maximumf %26, %27 : vector<32x16xf32>
    %cst_16 = arith.constant dense<0.000000e+00> : vector<32x16xf32>
    %29 = tpu.matmul %1, %28, %cst_16 {dimension_numbers = #tpu.dot_dimension_numbers<[1], [0], [0], [1], [0, 0, 1, 1], [], []>} : vector<32x32xf32>, vector<32x16xf32>, vector<32x16xf32> -> vector<32x16xf32>
    %cst_17 = arith.constant dense<0.000000e+00> : vector<32xf32>
    %30 = vector.multi_reduction <add>, %29, %cst_17 [1] : vector<32x16xf32> to vector<32xf32>
    %31 = vector.shape_cast %30 : vector<32xf32> to vector<32x1xf32>
    %cst_18 = arith.constant 1.600000e+01 : f32
    %32 = vector.broadcast %cst_18 : f32 to vector<32x1xf32>
    %33 = arith.divf %31, %32 : vector<32x1xf32>
    %34 = vector.broadcast %33 : vector<32x1xf32> to vector<32x16xf32>
    %35 = arith.subf %29, %34 : vector<32x16xf32>
    %36 = vector.broadcast %33 : vector<32x1xf32> to vector<32x16xf32>
    %37 = arith.subf %29, %36 : vector<32x16xf32>
    %38 = arith.mulf %35, %37 : vector<32x16xf32>
    %cst_19 = arith.constant dense<0.000000e+00> : vector<32xf32>
    %39 = vector.multi_reduction <add>, %38, %cst_19 [1] : vector<32x16xf32> to vector<32xf32>
    %40 = vector.shape_cast %39 : vector<32xf32> to vector<32x1xf32>
    %cst_20 = arith.constant 1.600000e+01 : f32
    %41 = vector.broadcast %cst_20 : f32 to vector<32x1xf32>
    %42 = arith.divf %40, %41 : vector<32x1xf32>
    %43 = vector.broadcast %33 : vector<32x1xf32> to vector<32x16xf32>
    %44 = arith.subf %29, %43 : vector<32x16xf32>
    %cst_21 = arith.constant 9.99999974E-6 : f32
    %45 = vector.broadcast %cst_21 : f32 to vector<32x1xf32>
    %46 = arith.addf %42, %45 : vector<32x1xf32>
    %47 = math.rsqrt %46 : vector<32x1xf32>
    %48 = vector.broadcast %47 : vector<32x1xf32> to vector<32x16xf32>
    %49 = arith.mulf %44, %48 : vector<32x16xf32>
    %cst_22 = arith.constant 0.000000e+00 : f32
    %50 = vector.broadcast %cst_22 : f32 to vector<32x16xf32>
    %51 = arith.maximumf %49, %50 : vector<32x16xf32>
    %cst_23 = arith.constant dense<0.000000e+00> : vector<8x16xf32>
    %52 = tpu.matmul %2, %51, %cst_23 {dimension_numbers = #tpu.dot_dimension_numbers<[1], [0], [0], [1], [0, 0, 1, 1], [], []>} : vector<8x32xf32>, vector<32x16xf32>, vector<8x16xf32> -> vector<8x16xf32>
    %53 = vector.broadcast %3 : vector<8x1xf32> to vector<8x16xf32>
    %54 = arith.addf %52, %53 : vector<8x16xf32>
    %c0_24 = arith.constant 0 : index
    %c0_25 = arith.constant 0 : index
    %c0_26 = arith.constant 0 : index
    %55 = vector.load %arg6[%c0_24, %c0_25, %c0_26] : memref<1x8x16xf32, #tpu.memory_space<vmem>>, vector<1x8x16xf32>
    %56 = vector.shape_cast %55 : vector<1x8x16xf32> to vector<8x16xf32>
    %57 = vector.shape_cast %54 : vector<8x16xf32> to vector<1x8x16xf32>
    tpu.vector_store %arg6[%c0_24, %c0_25, %c0_26], %57 {strides = array<i32>} : memref<1x8x16xf32, #tpu.memory_space<vmem>>, vector<1x8x16xf32>,
    return
  }
  func.func @transform_0(%arg0: i32) -> (i32, i32, i32) {
    %c0_i32 = arith.constant 0 : i32
    %c0_i32_0 = arith.constant 0 : i32
    %c0_i32_1 = arith.constant 0 : i32
    return %arg0, %c0_i32, %c0_i32_0 : i32, i32, i32
  }
  func.func @transform_1(%arg0: i32) -> (i32, i32) {
    %c0_i32 = arith.constant 0 : i32
    %c0_i32_0 = arith.constant 0 : i32
    %c0_i32_1 = arith.constant 0 : i32
    return %c0_i32, %c0_i32_0 : i32, i32
  }
  func.func @transform_2(%arg0: i32) -> (i32, i32) {
    %c0_i32 = arith.constant 0 : i32
    %c0_i32_0 = arith.constant 0 : i32
    %c0_i32_1 = arith.constant 0 : i32
    return %c0_i32, %c0_i32_0 : i32, i32
  }
  func.func @transform_3(%arg0: i32) -> (i32, i32) {
    %c0_i32 = arith.constant 0 : i32
    %c0_i32_0 = arith.constant 0 : i32
    %c0_i32_1 = arith.constant 0 : i32
    return %c0_i32, %c0_i32_0 : i32, i32
  }
  func.func @transform_4(%arg0: i32) -> (i32, i32) {
    %c0_i32 = arith.constant 0 : i32
    %c0_i32_0 = arith.constant 0 : i32
    %c0_i32_1 = arith.constant 0 : i32
    return %c0_i32, %c0_i32_0 : i32, i32
  }
  func.func @transform_5(%arg0: i32) -> (i32, i32, i32) {
    %c0_i32 = arith.constant 0 : i32
    %c0_i32_0 = arith.constant 0 : i32
    %c0_i32_1 = arith.constant 0 : i32
    return %arg0, %c0_i32, %c0_i32_0 : i32, i32, i32
  }
}

</mosaic_0001>

<llo_original>
// kernel: tpu_custom_call.1
$region0: #{tpu_custom_call.1}
  #allocation0 [shape = 'u32[]', space=smem, size = 0x4, offset = 0x4, fixed_abs, tag = 'smem constant byte address 0x4 - core index']
  #allocation1 [shape = 'u32[144,128]{1,0:T(1,128)}', space=vmem, size = 0x12000, scoped, tag = 'internal scratch']
  %s0 = inlined_call_operand.vmem [shape: f32[2,4,16], index: 0, kind: input, shape index: {}]
  %s1 = inlined_call_operand.vmem [shape: f32[32,4], index: 1, kind: input, shape index: {}]
  %s2 = inlined_call_operand.vmem [shape: f32[32,32], index: 2, kind: input, shape index: {}]
  %s3 = inlined_call_operand.vmem [shape: f32[8,32], index: 3, kind: input, shape index: {}]
  %s4 = inlined_call_operand.vmem [shape: f32[8,1], index: 4, kind: input, shape index: {}]
  %s5 = inlined_call_operand.hbm [shape: f32[2,8,16], index: 5, kind: output, shape index: {}]
  %s6 = sld [smem:[#allocation0]]
  $region53: #{tpu_custom_call.1} parent=0
    _
  %s8 = ssub.s32 1, %s6
  %s9 = scalar_select 0, %s8, %s6
  $region1: #{tpu_custom_call.1} parent=0
    #allocation2 [shape = 'u8[8192]{0}', space=vmem, size = 0x2000, scoped, tag = 'output window, operand 0']
    #allocation3 [shape = 's32[2]{0}', space=sflag, size = 0x8, scoped, tag = 'scoped memory for tpu_custom_call.1']
    %10 = vsyncpa [#allocation3], 0
    %s11 = scalar_lea.sflag [#allocation3], 1
    %12 = vsyncpa %s11, 0
    loop: start=0, step=1, limit=4
    $region2: #{tpu_custom_call.1} parent=1 // loop_pre_header
      _
    $region3: #{tpu_custom_call.1} parent=1 // loop_header
      %s14 = sphi 0, %s18
      %p15 = scmp.ge.s32.totalorder %s14, 4
      %s24 = sphi 0, %s26
      %s27 = sphi 0, %s24
      %s28 = sphi 0, %s27
      %s44 = sphi 0, %s28
      %s48 = sphi 0, %s48
      %s50 = sphi 0, %s48
      %s51 = sphi 0, %s50
      %s65 = sphi 0, %s51
      %s69 = sphi 0, %s69
      %s71 = sphi 0, %s69
      %s72 = sphi 0, %s71
      %s86 = sphi 0, %s72
      %s90 = sphi 0, %s90
      %s92 = sphi 0, %s90
      %s93 = sphi 0, %s92
      %s107 = sphi 0, %s93
      %s111 = sphi 0, %s111
      %s113 = sphi 0, %s111
      %s114 = sphi 0, %s113
      %s128 = sphi 0, %s114
      %s134 = sphi 0, %s136
      %s137 = sphi 0, %s134
      %s138 = sphi 0, %s137
      %s154 = sphi 0, %s138
    $region4: #{tpu_custom_call.1} parent=1 // loop_header_branch
      %17 = sbr.rel (%p15) target = $region8
    $region5: #{tpu_custom_call.1} parent=1 // loop_body
      %s19 = ssub.s32 %s14, 1
      %s20 = ssub.s32 %s14, 2
      %s21 = sadd.s32 %s14, 1
      %s22 = ssub.s32 %s14, %s21
      %p23 = scmp.eq.s32.totalorder %s22, 0
      %s25 = sadd.s32 %s24, 1
      %s26 = scalar_select %p23, %s24, %s25
      %p29 = pneg %p23
      %p30 = scmp.eq.s32.totalorder %s14, 1
      %p31 = por %p29, %p30
      %p32 = scmp.ne.s32.totalorder %s24, %s27
      %p33 = scmp.eq.s32.totalorder %s14, 0
      %p34 = por %p32, %p33
      %p35 = scmp.ne.s32.totalorder %s24, %s27
      %p36 = scmp.eq.s32.totalorder %s19, 1
      %p37 = por %p35, %p36
      %p38 = scmp.ne.s32.totalorder %s27, %s28
      %p39 = scmp.eq.s32.totalorder %s19, 0
      %p40 = por %p38, %p39
      %p41 = scmp.ne.s32.totalorder %s27, %s28
      %p42 = scmp.eq.s32.totalorder %s20, 1
      %p43 = por %p41, %p42
      %p45 = scmp.ne.s32.totalorder %s28, %s44
      %p46 = scmp.eq.s32.totalorder %s20, 0
      %p47 = por %p45, %p46
      %s49 = sadd.s32 %s48, 1
      %p52 = scmp.eq.s32.totalorder %s14, 1
      %p53 = scmp.ne.s32.totalorder %s48, %s50
      %p54 = scmp.eq.s32.totalorder %s14, 0
      %p55 = por %p53, %p54
      %p56 = scmp.ne.s32.totalorder %s48, %s50
      %p57 = scmp.eq.s32.totalorder %s19, 1
      %p58 = por %p56, %p57
      %p59 = scmp.ne.s32.totalorder %s50, %s51
      %p60 = scmp.eq.s32.totalorder %s19, 0
      %p61 = por %p59, %p60
      %p62 = scmp.ne.s32.totalorder %s50, %s51
      %p63 = scmp.eq.s32.totalorder %s20, 1
      %p64 = por %p62, %p63
      %p66 = scmp.ne.s32.totalorder %s51, %s65
      %p67 = scmp.eq.s32.totalorder %s20, 0
      %p68 = por %p66, %p67
      %s70 = sadd.s32 %s69, 1
      %p73 = scmp.eq.s32.totalorder %s14, 1
      %p74 = scmp.ne.s32.totalorder %s69, %s71
      %p75 = scmp.eq.s32.totalorder %s14, 0
      %p76 = por %p74, %p75
      %p77 = scmp.ne.s32.totalorder %s69, %s71
      %p78 = scmp.eq.s32.totalorder %s19, 1
      %p79 = por %p77, %p78
      %p80 = scmp.ne.s32.totalorder %s71, %s72
      %p81 = scmp.eq.s32.totalorder %s19, 0
      %p82 = por %p80, %p81
      %p83 = scmp.ne.s32.totalorder %s71, %s72
      %p84 = scmp.eq.s32.totalorder %s20, 1
      %p85 = por %p83, %p84
      %p87 = scmp.ne.s32.totalorder %s72, %s86
      %p88 = scmp.eq.s32.totalorder %s20, 0
      %p89 = por %p87, %p88
      %s91 = sadd.s32 %s90, 1
      %p94 = scmp.eq.s32.totalorder %s14, 1
      %p95 = scmp.ne.s32.totalorder %s90, %s92
      %p96 = scmp.eq.s32.totalorder %s14, 0
      %p97 = por %p95, %p96
      %p98 = scmp.ne.s32.totalorder %s90, %s92
      %p99 = scmp.eq.s32.totalorder %s19, 1
      %p100 = por %p98, %p99
      %p101 = scmp.ne.s32.totalorder %s92, %s93
      %p102 = scmp.eq.s32.totalorder %s19, 0
      %p103 = por %p101, %p102
      %p104 = scmp.ne.s32.totalorder %s92, %s93
      %p105 = scmp.eq.s32.totalorder %s20, 1
      %p106 = por %p104, %p105
      %p108 = scmp.ne.s32.totalorder %s93, %s107
      %p109 = scmp.eq.s32.totalorder %s20, 0
      %p110 = por %p108, %p109
      %s112 = sadd.s32 %s111, 1
      %p115 = scmp.eq.s32.totalorder %s14, 1
      %p116 = scmp.ne.s32.totalorder %s111, %s113
      %p117 = scmp.eq.s32.totalorder %s14, 0
      %p118 = por %p116, %p117
      %p119 = scmp.ne.s32.totalorder %s111, %s113
      %p120 = scmp.eq.s32.totalorder %s19, 1
      %p121 = por %p119, %p120
      %p122 = scmp.ne.s32.totalorder %s113, %s114
      %p123 = scmp.eq.s32.totalorder %s19, 0
      %p124 = por %p122, %p123
      %p125 = scmp.ne.s32.totalorder %s113, %s114
      %p126 = scmp.eq.s32.totalorder %s20, 1
      %p127 = por %p125, %p126
      %p129 = scmp.ne.s32.totalorder %s114, %s128
      %p130 = scmp.eq.s32.totalorder %s20, 0
      %p131 = por %p129, %p130
      %s132 = ssub.s32 %s14, %s21
      %p133 = scmp.eq.s32.totalorder %s132, 0
      %s135 = sadd.s32 %s134, 1
      %s136 = scalar_select %p133, %s134, %s135
      %p139 = pneg %p133
      %p140 = scmp.eq.s32.totalorder %s14, 1
      %p141 = por %p139, %p140
      %p142 = scmp.ne.s32.totalorder %s134, %s137
      %p143 = scmp.eq.s32.totalorder %s14, 0
      %p144 = por %p142, %p143
      %p145 = scmp.ne.s32.totalorder %s134, %s137
      %p146 = scmp.eq.s32.totalorder %s19, 1
      %p147 = por %p145, %p146
      %p148 = scmp.ne.s32.totalorder %s137, %s138
      %p149 = scmp.eq.s32.totalorder %s19, 0
      %p150 = por %p148, %p149
      %p151 = scmp.ne.s32.totalorder %s137, %s138
      %p152 = scmp.eq.s32.totalorder %s20, 1
      %p153 = por %p151, %p152
      %p155 = scmp.ne.s32.totalorder %s138, %s154
      %p156 = scmp.eq.s32.totalorder %s20, 0
      %p157 = por %p155, %p156
      %p158 = scmp.le.s32.totalorder 1, %s14
      %p159 = scmp.lt.s32.totalorder %s14, 3
      %p160 = pnand %p158, %p159
      %p161 = pneg %p160
      // Predicated region
      $region9: #{tpu_custom_call.1} parent=5 // pred_check
        _
      $region10: #{tpu_custom_call.1} parent=5 // pred_check_branch
        %163 = sbr.rel (%p160) target = $region12
      $region11: #{tpu_custom_call.1} parent=5 // pred_region
        %s164 = ssub.s32 %s14, 1
        // Predicated region
        $region13: #{tpu_custom_call.1} parent=11 // pred_check
          %p165 = pneg %p61
        $region14: #{tpu_custom_call.1} parent=11 // pred_check_branch
          %167 = sbr.rel (%p165) target = $region16
        $region15: #{tpu_custom_call.1} parent=11 // pred_region
          _
        $region16: #{tpu_custom_call.1} parent=11 // pred_fallthru
          _
        // Predicated region
        $region17: #{tpu_custom_call.1} parent=11 // pred_check
          %p168 = pneg %p82
        $region18: #{tpu_custom_call.1} parent=11 // pred_check_branch
          %170 = sbr.rel (%p168) target = $region20
        $region19: #{tpu_custom_call.1} parent=11 // pred_region
          _
        $region20: #{tpu_custom_call.1} parent=11 // pred_fallthru
          _
        // Predicated region
        $region21: #{tpu_custom_call.1} parent=11 // pred_check
          %p171 = pneg %p103
        $region22: #{tpu_custom_call.1} parent=11 // pred_check_branch
          %173 = sbr.rel (%p171) target = $region24
        $region23: #{tpu_custom_call.1} parent=11 // pred_region
          _
        $region24: #{tpu_custom_call.1} parent=11 // pred_fallthru
          _
        // Predicated region
        $region25: #{tpu_custom_call.1} parent=11 // pred_check
          %p174 = pneg %p124
        $region26: #{tpu_custom_call.1} parent=11 // pred_check_branch
          %176 = sbr.rel (%p174) target = $region28
        $region27: #{tpu_custom_call.1} parent=11 // pred_region
          _
        $region28: #{tpu_custom_call.1} parent=11 // pred_fallthru
          _
      $region12: #{tpu_custom_call.1} parent=5 // pred_fallthru
        _
      %p177 = scmp.lt.s32.totalorder %s14, 2
      // Predicated region
      $region29: #{tpu_custom_call.1} parent=5 // pred_check
        %p178 = pneg %p177
      $region30: #{tpu_custom_call.1} parent=5 // pred_check_branch
        %180 = sbr.rel (%p178) target = $region32
      $region31: #{tpu_custom_call.1} parent=5 // pred_region
        // Predicated region
        $region33: #{tpu_custom_call.1} parent=31 // pred_check
          %p181 = pneg %p34
        $region34: #{tpu_custom_call.1} parent=31 // pred_check_branch
          %183 = sbr.rel (%p181) target = $region36
        $region35: #{tpu_custom_call.1} parent=31 // pred_region
          %p184 = scmp.lt.s32.totalorder %s14, 1
          %s185 = scalar_select %p184, %s14, 1
          %s186 = smul.addr %s185, 4
          %s187 = scalar_lea.vmem %s0, %s186
        $region36: #{tpu_custom_call.1} parent=31 // pred_fallthru
          _
      $region32: #{tpu_custom_call.1} parent=5 // pred_fallthru
        _
      %p188 = scmp.le.s32.totalorder 1, %s14
      %p189 = scmp.lt.s32.totalorder %s14, 3
      %p190 = pnand %p188, %p189
      %p191 = pneg %p190
      // Predicated region
      $region37: #{tpu_custom_call.1} parent=5 // pred_check
        _
      $region38: #{tpu_custom_call.1} parent=5 // pred_check_branch
        %193 = sbr.rel (%p190) target = $region40
      $region39: #{tpu_custom_call.1} parent=5 // pred_region
        %s194 = ssub.s32 %s14, 1
        %p195 = scmp.lt.s32.totalorder %s19, 1
        %s196 = scalar_select %p195, %s19, 1
        %s197 = smul.addr %s196, 4
        %s198 = scalar_lea.vmem %s0, %s197
        %p199 = pneg %p40
        %p200 = pneg %p37
        %p201 = pneg %p61
        %p202 = pneg %p58
        %p203 = pneg %p82
        %p204 = pneg %p79
        %p205 = pneg %p103
        %p206 = pneg %p100
        %p207 = pneg %p124
        %p208 = pneg %p121
        %p209 = pneg %p150
        %p210 = pneg %p147
        %s211 = sand.u32 %s137, 1
        %s212 = scalar_lea.sflag [#allocation3], %s211
        %s213 = sand.u32 %s137, 1
        %s214 = smul.addr %s213, 8
        %s215 = scalar_lea.vmem [#allocation2], %s214
        %p216 = scmp.lt.s32.totalorder %s19, 1
        %s217 = scalar_select %p216, %s19, 1
        %s218 = smul.addr %s217, 4
        %s219 = scalar_lea.vmem %s0, %s218
        %v220 = vld [vmem:[%s1] sm:$0xff]
        %v221 = vld [vmem:[%s1 + $0x8] sm:$0xff]
        %v222 = vld [vmem:[%s1 + $0x10] sm:$0xff]
        %v223 = vld [vmem:[%s1 + $0x18] sm:$0xff]
        %v224 = vld [vmem:[%s2] sm:$0xff]
        %v225 = vld [vmem:[%s2 + $0x8] sm:$0xff]
        %v226 = vld [vmem:[%s2 + $0x10] sm:$0xff]
        %v227 = vld [vmem:[%s2 + $0x18] sm:$0xff]
        %v228 = vld [vmem:[%s3] sm:$0xff]
        %v229 = vld [vmem:[%s4] sm:$0xff]
        %v230 = vld [vmem:[%s219] sm:$0xf]
        %vm231 = vcmask 31744
        %v233 = vsel %vm231, %v220, 0
        %v236 = vsel %vm231, %v221, 0
        %v239 = vsel %vm231, %v222, 0
        %v242 = vsel %vm231, %v223, 0
        %vm244 = vcmask 1043456
        %v246 = vsel %vm244, %v230, 0
        %248 = vmatprep.subr.mxu0 0.0
        %249 = vmatpush1.msra.mxu0 0.0
        %250 = vmatprep.subr.mxu0 0.0
        %251 = vmatpush1.msra.mxu0 0.0
        %252 = vmatprep.subr.mxu0 0.0
        %253 = vmatpush1.msra.mxu0 0.0
        %254 = vmatprep.subr.mxu0 0.0
        %255 = vmatpush1.msra.mxu0 0.0
        %256 = vmatprep.subr.mxu0 0.0
        %257 = vmatpush1.msra.mxu0 0.0
        %258 = vmatprep.subr.mxu0 0.0
        %259 = vmatpush1.msra.mxu0 0.0
        %260 = vmatprep.subr.mxu0 0.0
        %261 = vmatpush1.msra.mxu0 0.0
        %262 = vmatprep.subr.mxu0 0.0
        %263 = vmatpush1.msra.mxu0 0.0
        %264 = vmatprep.subr.mxu0 0.0
        %265 = vmatpush1.msra.mxu0 0.0
        %266 = vmatprep.subr.mxu0 0.0
        %267 = vmatpush1.msra.mxu0 0.0
        %268 = vmatprep.subr.mxu0 0.0
        %269 = vmatpush1.msra.mxu0 0.0
        %270 = vmatprep.subr.mxu0 0.0
        %271 = vmatpush1.msra.mxu0 0.0
        %272 = vmatprep.subr.mxu0 0.0
        %273 = vmatpush1.msra.mxu0 0.0
        %274 = vmatprep.subr.mxu0 0.0
        %275 = vmatpush1.msra.mxu0 0.0
        %276 = vmatprep.subr.mxu0 0.0
        %277 = vmatpush1.msra.mxu0 0.0
        %278 = vmatprep.subr.mxu0 0.0
        %279 = vmatpush1.msra.mxu0 %v246
        %280 = vmatprep.subr.mxu0 0.0
        %281 = vmatpush2.msra.mxu0 0.0
        %282 = vmatprep.subr.mxu0 0.0
        %283 = vmatpush2.msra.mxu0 0.0
        %284 = vmatprep.subr.mxu0 0.0
        %285 = vmatpush2.msra.mxu0 0.0
        %286 = vmatprep.subr.mxu0 0.0
        %287 = vmatpush2.msra.mxu0 0.0
        %288 = vmatprep.subr.mxu0 0.0
        %289 = vmatpush2.msra.mxu0 0.0
        %290 = vmatprep.subr.mxu0 0.0
        %291 = vmatpush2.msra.mxu0 0.0
        %292 = vmatprep.subr.mxu0 0.0
        %293 = vmatpush2.msra.mxu0 0.0
        %294 = vmatprep.subr.mxu0 0.0
        %295 = vmatpush2.msra.mxu0 0.0
        %296 = vmatprep.subr.mxu0 0.0
        %297 = vmatpush2.msra.mxu0 0.0
        %298 = vmatprep.subr.mxu0 0.0
        %299 = vmatpush2.msra.mxu0 0.0
        %300 = vmatprep.subr.mxu0 0.0
        %301 = vmatpush2.msra.mxu0 0.0
        %302 = vmatprep.subr.mxu0 0.0
        %303 = vmatpush2.msra.mxu0 0.0
        %304 = vmatprep.subr.mxu0 0.0
        %305 = vmatpush2.msra.mxu0 0.0
        %306 = vmatprep.subr.mxu0 0.0
        %307 = vmatpush2.msra.mxu0 0.0
        %308 = vmatprep.subr.mxu0 0.0
        %309 = vmatpush2.msra.mxu0 0.0
        %310 = vmatprep.subr.mxu0 0.0
        %311 = vmatpush2.msra.mxu0 0.0
        %312 = vmatprep.mubr.f32.mxu0 0.0
        %313 = vmatmul.mubr.f32.gmra.mxu0 %v233
        %v314 = vpop.f32.mrf.mxu0
        %v315 = vadd.f32 0.0, %v314
        %v316 = vpop.f32.mrf.mxu0
        %317 = vmatprep.mubr.f32.mxu0 0.0
        %318 = vmatmul.mubr.f32.gmra.mxu0 %v236
        %v319 = vpop.f32.mrf.mxu0
        %v320 = vadd.f32 0.0, %v319
        %v321 = vpop.f32.mrf.mxu0
        %322 = vmatprep.mubr.f32.mxu0 0.0
        %323 = vmatmul.mubr.f32.gmra.mxu0 %v239
        %v324 = vpop.f32.mrf.mxu0
        %v325 = vadd.f32 0.0, %v324
        %v326 = vpop.f32.mrf.mxu0
        %327 = vmatprep.mubr.f32.mxu0 0.0
        %328 = vmatmul.mubr.f32.gmra.mxu0 %v242
        %v329 = vpop.f32.mrf.mxu0
        %v330 = vadd.f32 0.0, %v329
        %v331 = vpop.f32.mrf.mxu0
        %332 = vdwg.mxu0
        %vm333 = vcmask 130048
        %v334 = vsel %vm333, %v315, 0.0
        %335 = vadd.xlane.f32.xlu0 %v334
        %v336 = vpop.xlane.xlu0 %335
        %v337 = vsel %vm333, %v320, 0.0
        %338 = vadd.xlane.f32.xlu0 %v337
        %v339 = vpop.xlane.xlu0 %338
        %v340 = vsel %vm333, %v325, 0.0
        %341 = vadd.xlane.f32.xlu0 %v340
        %v342 = vpop.xlane.xlu0 %341
        %v343 = vsel %vm333, %v330, 0.0
        %344 = vadd.xlane.f32.xlu0 %v343
        %v345 = vpop.xlane.xlu0 %344
        %v346 = vrcp.pop 16.0
        %v347 = vmul.f32 %v336, %v346
        %v348 = vmul.f32 %v339, %v346
        %v349 = vmul.f32 %v342, %v346
        %v350 = vmul.f32 %v345, %v346
        %v351 = vsub.f32 %v315, %v347
        %v352 = vsub.f32 %v320, %v348
        %v353 = vsub.f32 %v325, %v349
        %v354 = vsub.f32 %v330, %v350
        %v355 = vmul.f32 %v351, %v351
        %v356 = vmul.f32 %v352, %v352
        %v357 = vmul.f32 %v353, %v353
        %v358 = vmul.f32 %v354, %v354
        %v359 = vsel %vm333, %v355, 0.0
        %360 = vadd.xlane.f32.xlu0 %v359
        %v361 = vpop.xlane.xlu0 %360
        %v362 = vsel %vm333, %v356, 0.0
        %363 = vadd.xlane.f32.xlu0 %v362
        %v364 = vpop.xlane.xlu0 %363
        %v365 = vsel %vm333, %v357, 0.0
        %366 = vadd.xlane.f32.xlu0 %v365
        %v367 = vpop.xlane.xlu0 %366
        %v368 = vsel %vm333, %v358, 0.0
        %369 = vadd.xlane.f32.xlu0 %v368
        %v370 = vpop.xlane.xlu0 %369
        %v371 = vmul.f32 %v361, %v346
        %v372 = vmul.f32 %v364, %v346
        %v373 = vmul.f32 %v367, %v346
        %v374 = vmul.f32 %v370, %v346
        %v375 = vadd.f32 %v371, 1e-05
        %v376 = vadd.f32 %v372, 1e-05
        %v377 = vadd.f32 %v373, 1e-05
        %v378 = vadd.f32 %v374, 1e-05
        %v379 = vrsqrt.pop %v375
        %v380 = vrsqrt.pop %v376
        %v381 = vrsqrt.pop %v377
        %v382 = vrsqrt.pop %v378
        %v383 = vmul.f32 %v351, %v379
        %v384 = vmul.f32 %v352, %v380
        %v385 = vmul.f32 %v353, %v381
        %v386 = vmul.f32 %v354, %v382
        %v387 = vmax.f32 %v383, 0.0
        %v388 = vmax.f32 %v384, 0.0
        %v389 = vmax.f32 %v385, 0.0
        %v390 = vmax.f32 %v386, 0.0
        %vm391 = vcmask 261120
        %v393 = vsel %vm391, %v224, 0
        %v396 = vsel %vm391, %v225, 0
        %v399 = vsel %vm391, %v226, 0
        %v402 = vsel %vm391, %v227, 0
        %404 = vmatprep.subr.mxu0 0.0
        %405 = vmatpush1.msra.mxu0 0.0
        %406 = vmatprep.subr.mxu0 0.0
        %407 = vmatpush1.msra.mxu0 0.0
        %408 = vmatprep.subr.mxu0 0.0
        %409 = vmatpush1.msra.mxu0 0.0
        %410 = vmatprep.subr.mxu0 0.0
        %411 = vmatpush1.msra.mxu0 0.0
        %412 = vmatprep.subr.mxu0 0.0
        %413 = vmatpush1.msra.mxu0 0.0
        %414 = vmatprep.subr.mxu0 0.0
        %415 = vmatpush1.msra.mxu0 0.0
        %416 = vmatprep.subr.mxu0 0.0
        %417 = vmatpush1.msra.mxu0 0.0
        %418 = vmatprep.subr.mxu0 0.0
        %419 = vmatpush1.msra.mxu0 0.0
        %420 = vmatprep.subr.mxu0 0.0
        %421 = vmatpush1.msra.mxu0 0.0
        %422 = vmatprep.subr.mxu0 0.0
        %423 = vmatpush1.msra.mxu0 0.0
        %424 = vmatprep.subr.mxu0 0.0
        %425 = vmatpush1.msra.mxu0 0.0
        %426 = vmatprep.subr.mxu0 0.0
        %427 = vmatpush1.msra.mxu0 0.0
        %428 = vmatprep.subr.mxu0 0.0
        %429 = vmatpush1.msra.mxu0 %v390
        %430 = vmatprep.subr.mxu0 0.0
        %431 = vmatpush1.msra.mxu0 %v389
        %432 = vmatprep.subr.mxu0 0.0
        %433 = vmatpush1.msra.mxu0 %v388
        %434 = vmatprep.subr.mxu0 0.0
        %435 = vmatpush1.msra.mxu0 %v387
        %436 = vmatprep.subr.mxu0 0.0
        %437 = vmatpush2.msra.mxu0 0.0
        %438 = vmatprep.subr.mxu0 0.0
        %439 = vmatpush2.msra.mxu0 0.0
        %440 = vmatprep.subr.mxu0 0.0
        %441 = vmatpush2.msra.mxu0 0.0
        %442 = vmatprep.subr.mxu0 0.0
        %443 = vmatpush2.msra.mxu0 0.0
        %444 = vmatprep.subr.mxu0 0.0
        %445 = vmatpush2.msra.mxu0 0.0
        %446 = vmatprep.subr.mxu0 0.0
        %447 = vmatpush2.msra.mxu0 0.0
        %448 = vmatprep.subr.mxu0 0.0
        %449 = vmatpush2.msra.mxu0 0.0
        %450 = vmatprep.subr.mxu0 0.0
        %451 = vmatpush2.msra.mxu0 0.0
        %452 = vmatprep.subr.mxu0 0.0
        %453 = vmatpush2.msra.mxu0 0.0
        %454 = vmatprep.subr.mxu0 0.0
        %455 = vmatpush2.msra.mxu0 0.0
        %456 = vmatprep.subr.mxu0 0.0
        %457 = vmatpush2.msra.mxu0 0.0
        %458 = vmatprep.subr.mxu0 0.0
        %459 = vmatpush2.msra.mxu0 0.0
        %460 = vmatprep.subr.mxu0 0.0
        %461 = vmatpush2.msra.mxu0 0.0
        %462 = vmatprep.subr.mxu0 0.0
        %463 = vmatpush2.msra.mxu0 0.0
        %464 = vmatprep.subr.mxu0 0.0
        %465 = vmatpush2.msra.mxu0 0.0
        %466 = vmatprep.subr.mxu0 0.0
        %467 = vmatpush2.msra.mxu0 0.0
        %468 = vmatprep.mubr.f32.mxu0 0.0
        %469 = vmatmul.mubr.f32.gmra.mxu0 %v393
        %v470 = vpop.f32.mrf.mxu0
        %v471 = vadd.f32 0.0, %v470
        %v472 = vpop.f32.mrf.mxu0
        %473 = vmatprep.mubr.f32.mxu0 0.0
        %474 = vmatmul.mubr.f32.gmra.mxu0 %v396
        %v475 = vpop.f32.mrf.mxu0
        %v476 = vadd.f32 0.0, %v475
        %v477 = vpop.f32.mrf.mxu0
        %478 = vmatprep.mubr.f32.mxu0 0.0
        %479 = vmatmul.mubr.f32.gmra.mxu0 %v399
        %v480 = vpop.f32.mrf.mxu0
        %v481 = vadd.f32 0.0, %v480
        %v482 = vpop.f32.mrf.mxu0
        %483 = vmatprep.mubr.f32.mxu0 0.0
        %484 = vmatmul.mubr.f32.gmra.mxu0 %v402
        %v485 = vpop.f32.mrf.mxu0
        %v486 = vadd.f32 0.0, %v485
        %v487 = vpop.f32.mrf.mxu0
        %488 = vdwg.mxu0
        %v489 = vsel %vm333, %v471, 0.0
        %490 = vadd.xlane.f32.xlu0 %v489
        %v491 = vpop.xlane.xlu0 %490
        %v492 = vsel %vm333, %v476, 0.0
        %493 = vadd.xlane.f32.xlu0 %v492
        %v494 = vpop.xlane.xlu0 %493
        %v495 = vsel %vm333, %v481, 0.0
        %496 = vadd.xlane.f32.xlu0 %v495
        %v497 = vpop.xlane.xlu0 %496
        %v498 = vsel %vm333, %v486, 0.0
        %499 = vadd.xlane.f32.xlu0 %v498
        %v500 = vpop.xlane.xlu0 %499
        %v501 = vmul.f32 %v491, %v346
        %v502 = vmul.f32 %v494, %v346
        %v503 = vmul.f32 %v497, %v346
        %v504 = vmul.f32 %v500, %v346
        %v505 = vsub.f32 %v471, %v501
        %v506 = vsub.f32 %v476, %v502
        %v507 = vsub.f32 %v481, %v503
        %v508 = vsub.f32 %v486, %v504
        %v509 = vmul.f32 %v505, %v505
        %v510 = vmul.f32 %v506, %v506
        %v511 = vmul.f32 %v507, %v507
        %v512 = vmul.f32 %v508, %v508
        %v513 = vsel %vm333, %v509, 0.0
        %514 = vadd.xlane.f32.xlu0 %v513
        %v515 = vpop.xlane.xlu0 %514
        %v516 = vsel %vm333, %v510, 0.0
        %517 = vadd.xlane.f32.xlu0 %v516
        %v518 = vpop.xlane.xlu0 %517
        %v519 = vsel %vm333, %v511, 0.0
        %520 = vadd.xlane.f32.xlu0 %v519
        %v521 = vpop.xlane.xlu0 %520
        %v522 = vsel %vm333, %v512, 0.0
        %523 = vadd.xlane.f32.xlu0 %v522
        %v524 = vpop.xlane.xlu0 %523
        %v525 = vmul.f32 %v515, %v346
        %v526 = vmul.f32 %v518, %v346
        %v527 = vmul.f32 %v521, %v346
        %v528 = vmul.f32 %v524, %v346
        %v529 = vadd.f32 %v525, 1e-05
        %v530 = vadd.f32 %v526, 1e-05
        %v531 = vadd.f32 %v527, 1e-05
        %v532 = vadd.f32 %v528, 1e-05
        %v533 = vrsqrt.pop %v529
        %v534 = vrsqrt.pop %v530
        %v535 = vrsqrt.pop %v531
        %v536 = vrsqrt.pop %v532
        %v537 = vmul.f32 %v505, %v533
        %v538 = vmul.f32 %v506, %v534
        %v539 = vmul.f32 %v507, %v535
        %v540 = vmul.f32 %v508, %v536
        %v541 = vmax.f32 %v537, 0.0
        %v542 = vmax.f32 %v538, 0.0
        %v543 = vmax.f32 %v539, 0.0
        %v544 = vmax.f32 %v540, 0.0
        %546 = vset.pattern.permute.xlu0 0
        %547 = vperm.xlu0 %546, %v229
        %v548 = vpop.permute.xlu0 %547
        %v551 = vsel %vm391, %v228, 0
        %553 = vmatprep.subr.mxu0 0.0
        %554 = vmatpush1.msra.mxu0 0.0
        %555 = vmatprep.subr.mxu0 0.0
        %556 = vmatpush1.msra.mxu0 0.0
        %557 = vmatprep.subr.mxu0 0.0
        %558 = vmatpush1.msra.mxu0 0.0
        %559 = vmatprep.subr.mxu0 0.0
        %560 = vmatpush1.msra.mxu0 0.0
        %561 = vmatprep.subr.mxu0 0.0
        %562 = vmatpush1.msra.mxu0 0.0
        %563 = vmatprep.subr.mxu0 0.0
        %564 = vmatpush1.msra.mxu0 0.0
        %565 = vmatprep.subr.mxu0 0.0
        %566 = vmatpush1.msra.mxu0 0.0
        %567 = vmatprep.subr.mxu0 0.0
        %568 = vmatpush1.msra.mxu0 0.0
        %569 = vmatprep.subr.mxu0 0.0
        %570 = vmatpush1.msra.mxu0 0.0
        %571 = vmatprep.subr.mxu0 0.0
        %572 = vmatpush1.msra.mxu0 0.0
        %573 = vmatprep.subr.mxu0 0.0
        %574 = vmatpush1.msra.mxu0 0.0
        %575 = vmatprep.subr.mxu0 0.0
        %576 = vmatpush1.msra.mxu0 0.0
        %577 = vmatprep.subr.mxu0 0.0
        %578 = vmatpush1.msra.mxu0 %v544
        %579 = vmatprep.subr.mxu0 0.0
        %580 = vmatpush1.msra.mxu0 %v543
        %581 = vmatprep.subr.mxu0 0.0
        %582 = vmatpush1.msra.mxu0 %v542
        %583 = vmatprep.subr.mxu0 0.0
        %584 = vmatpush1.msra.mxu0 %v541
        %585 = vmatprep.subr.mxu0 0.0
        %586 = vmatpush2.msra.mxu0 0.0
        %587 = vmatprep.subr.mxu0 0.0
        %588 = vmatpush2.msra.mxu0 0.0
        %589 = vmatprep.subr.mxu0 0.0
        %590 = vmatpush2.msra.mxu0 0.0
        %591 = vmatprep.subr.mxu0 0.0
        %592 = vmatpush2.msra.mxu0 0.0
        %593 = vmatprep.subr.mxu0 0.0
        %594 = vmatpush2.msra.mxu0 0.0
        %595 = vmatprep.subr.mxu0 0.0
        %596 = vmatpush2.msra.mxu0 0.0
        %597 = vmatprep.subr.mxu0 0.0
        %598 = vmatpush2.msra.mxu0 0.0
        %599 = vmatprep.subr.mxu0 0.0
        %600 = vmatpush2.msra.mxu0 0.0
        %601 = vmatprep.subr.mxu0 0.0
        %602 = vmatpush2.msra.mxu0 0.0
        %603 = vmatprep.subr.mxu0 0.0
        %604 = vmatpush2.msra.mxu0 0.0
        %605 = vmatprep.subr.mxu0 0.0
        %606 = vmatpush2.msra.mxu0 0.0
        %607 = vmatprep.subr.mxu0 0.0
        %608 = vmatpush2.msra.mxu0 0.0
        %609 = vmatprep.subr.mxu0 0.0
        %610 = vmatpush2.msra.mxu0 0.0
        %611 = vmatprep.subr.mxu0 0.0
        %612 = vmatpush2.msra.mxu0 0.0
        %613 = vmatprep.subr.mxu0 0.0
        %614 = vmatpush2.msra.mxu0 0.0
        %615 = vmatprep.subr.mxu0 0.0
        %616 = vmatpush2.msra.mxu0 0.0
        %617 = vmatprep.mubr.f32.mxu0 0.0
        %618 = vmatmul.mubr.f32.gmra.mxu0 %v551
        %v619 = vpop.f32.mrf.mxu0
        %v620 = vadd.f32 %v548, %v619
        %v621 = vpop.f32.mrf.mxu0
        %622 = vdwg.mxu0
        %623 = vst.msk [vmem:[%s215] sm:$0xff] %vm333, %v620
        %s624 = sand.u32 %s137, 1
        %s625 = scalar_lea.sflag [#allocation3], %s624
        %s626 = sand.u32 %s137, 1
        %s627 = smul.addr %s626, 8
        %s628 = scalar_lea.vmem [#allocation2], %s627
        // Predicated region
        $region41: #{tpu_custom_call.1} parent=39 // pred_check
          %p629 = pneg %p147
        $region42: #{tpu_custom_call.1} parent=39 // pred_check_branch
          %631 = sbr.rel (%p629) target = $region44
        $region43: #{tpu_custom_call.1} parent=39 // pred_region
          %s633 = ssub.s32 128, 128
          %634 = vsyncadd %s625, %s633
          %s635 = smul.addr %s19, 128
          %s636 = scalar_lea.hbm %s5, %s635
          %s638 = sshll.u32 %s628, 4
          %s639 = int_to_ptr.vmem [resolvable:$true] %s638
          %641 = dma.vmem_to_hbm [thread:$0]  %s639, 128, %s636, %s625
        $region44: #{tpu_custom_call.1} parent=39 // pred_fallthru
          _
      $region40: #{tpu_custom_call.1} parent=5 // pred_fallthru
        _
      %p642 = scmp.le.s32.totalorder 2, %s14
      // Predicated region
      $region45: #{tpu_custom_call.1} parent=5 // pred_check
        %p643 = pneg %p642
      $region46: #{tpu_custom_call.1} parent=5 // pred_check_branch
        %645 = sbr.rel (%p643) target = $region48
      $region47: #{tpu_custom_call.1} parent=5 // pred_region
        %s646 = ssub.s32 %s14, 2
        // Predicated region
        $region49: #{tpu_custom_call.1} parent=47 // pred_check
          %p647 = pneg %p153
        $region50: #{tpu_custom_call.1} parent=47 // pred_check_branch
          %649 = sbr.rel (%p647) target = $region52
        $region51: #{tpu_custom_call.1} parent=47 // pred_region
          %s650 = sand.u32 %s138, 1
          %s651 = scalar_lea.sflag [#allocation3], %s650
          %s652 = sand.u32 %s138, 1
          %s653 = smul.addr %s652, 8
          %s654 = scalar_lea.vmem [#allocation2], %s653
          %655 = dma.done %s651, 128
        $region52: #{tpu_custom_call.1} parent=47 // pred_fallthru
          _
      $region48: #{tpu_custom_call.1} parent=5 // pred_fallthru
        _
    $region6: #{tpu_custom_call.1} parent=1 // loop_footer
      %s18 = sadd.s32 1, %s14
    $region7: #{tpu_custom_call.1} parent=1 // loop_footer_branch
      %13 = sbr.rel target = $region3
    $region8: #{tpu_custom_call.1} parent=1 // loop_exit
      _
    %656 = vsyncpa [#allocation3], 1
    %s657 = scalar_lea.sflag [#allocation3], 1
    %658 = vsyncpa %s657, 1

</llo_original>
